<compile_context>
chip_gen: v7x
topology: tpu7x:2x2x1
jax: 0.10.0
libtpu: 0.0.40
codegen_flags: <defaults>
</compile_context>

<pallas_src>
import functools

import jax
import jax.numpy as jnp
from jax.experimental import pallas as pl
from jax.experimental.pallas import tpu as pltpu


_TARGET_BLOCK_ELEMS = 512 * 1024   # ~2 MiB f32 per block; safe double-buffered
                                   # on v5e/v6e/v7x scoped-VMEM defaults.
_MAX_LANE = 2048                   # widest lane slab to search for
_LANE_TARGET = 1024                # fallback / channel-folding lane target


def _softplus_core(shifted, threshold):
    # PyTorch F.softplus (internal threshold 20) + module-level switchover.
    sp_raw = jnp.log1p(jnp.exp(jnp.minimum(shifted, 20.0)))
    if threshold is not None and threshold < 20.0:
        # Single compare+select: for shifted > 20, sp_raw saturates at ~20.0
        # in f32, which exceeds any threshold < 20, so `shifted` is selected —
        # identical to the two-select formulation.
        return jnp.where(sp_raw > jnp.float32(threshold), shifted, sp_raw)
    # threshold is None or >= 20: the internal linearization already returns
    # `shifted` above 20 and the module-level select is a no-op in f32.
    return jnp.where(shifted > 20.0, shifted, sp_raw)


def _ps_scalar_kernel(params_ref, x_ref, o_ref, *, threshold, minimum):
    # params_ref: SMEM (3,) f32 = [alpha, beta, gamma]
    alpha = params_ref[0]
    beta = params_ref[1]
    gamma = params_ref[2]

    x = x_ref[...].astype(jnp.float32)          # native-dtype tile -> f32 in vregs
    shifted = beta * x + gamma
    out = alpha * _softplus_core(shifted, threshold)
    if minimum is not None:
        out = jnp.maximum(out, jnp.float32(minimum))
    o_ref[...] = out.astype(o_ref.dtype)        # single lane-dense store


def _ps_channel_kernel(x_ref, p_ref, o_ref, *, threshold, minimum):
    x = x_ref[...].astype(jnp.float32)          # (tm, W)
    p = p_ref[...]                              # (3, W) f32, packed params
    alpha = p[0:1, :]
    beta = p[1:2, :]
    gamma = p[2:3, :]
    shifted = beta * x + gamma                  # (1, W) broadcasts over rows
    out = alpha * _softplus_core(shifted, threshold)
    if minimum is not None:
        out = jnp.maximum(out, jnp.float32(minimum))
    o_ref[...] = out.astype(o_ref.dtype)


def _pick_row_tile(rows, lane):
    """Row-tile of ~_TARGET_BLOCK_ELEMS elements (multiple of 8), or the full
    row extent when it already fits in a single block (ragged dims allowed)."""
    tm = max(8, (_TARGET_BLOCK_ELEMS // max(1, lane)) // 8 * 8)
    if rows <= tm:
        return rows
    return tm


def _scalar_param_path(x, a, b, g, threshold, minimum, orig_shape, orig_dtype):
    total = int(x.size)

    # Largest lane width (multiple of 128, <= 2048) that divides the element
    # count: avoids the jnp.pad + output-slice full-HBM-pass copies entirely.
    lane = 0
    for cand in range(_MAX_LANE, 127, -128):
        if total % cand == 0:
            lane = cand
            break

    if lane:
        rows = total // lane
        x2 = x.reshape(rows, lane)              # free bitcast, no copy
        padded = False
    else:
        # Rare fallback: element count not a multiple of 128 -> one pad+slice.
        lane = _LANE_TARGET if total >= _LANE_TARGET else 128
        rows = pl.cdiv(total, lane)
        xf = jnp.pad(x.reshape(-1), (0, rows * lane - total))
        x2 = xf.reshape(rows, lane)
        padded = True

    tm = _pick_row_tile(rows, lane)
    grid = (pl.cdiv(rows, tm),)                 # ragged last block masked by Pallas

    params = jnp.stack([a[0], b[0], g[0]]).astype(jnp.float32)

    kernel = functools.partial(
        _ps_scalar_kernel, threshold=threshold, minimum=minimum)

    itemsize = jnp.dtype(orig_dtype).itemsize
    n = rows * lane
    cost = pl.CostEstimate(
        flops=6 * n,
        transcendentals=2 * n,                  # exp + log1p per element
        bytes_accessed=2 * n * itemsize)

    out2 = pl.pallas_call(
        kernel,
        out_shape=jax.ShapeDtypeStruct((rows, lane), orig_dtype),
        grid_spec=pltpu.PrefetchScalarGridSpec(
            num_scalar_prefetch=0,
            grid=grid,
            in_specs=[
                pl.BlockSpec(memory_space=pltpu.MemorySpace.SMEM),  # [alpha,beta,gamma]
                pl.BlockSpec((tm, lane), lambda i: (i, 0)),         # x tile
            ],
            out_specs=pl.BlockSpec((tm, lane), lambda i: (i, 0)),
        ),
        compiler_params=pltpu.CompilerParams(
            dimension_semantics=("parallel",)),  # lets v7x shard tiles across TCs
        cost_estimate=cost,
    )(params, x2)

    if padded:
        return out2.reshape(-1)[:total].reshape(orig_shape)
    return out2.reshape(orig_shape)


def _channel_param_path(x, a, b, g, S, threshold, minimum, orig_shape, orig_dtype):
    # NOTE: matches PyTorch right-aligned broadcasting — shape=(S,) parameters
    # broadcast against the LAST dim of x (so S must be 1 or x.shape[-1]).
    D = orig_shape[-1]
    assert S in (1, D), "parameters must broadcast against the last dim"

    x2 = x.reshape(-1, D)
    M = x2.shape[0]

    # Lane-densify small D: fold k consecutive rows into the lane dim so the
    # output last dim is ~1024 wide (unmasked stores, full vreg occupancy).
    # k is chosen as a divisor of M so no padding / slicing copies are needed.
    k = 1
    limit = max(1, _LANE_TARGET // max(1, D))
    for cand in range(min(limit, M), 0, -1):
        if M % cand == 0:
            k = cand
            break
    W = k * D
    Mr = M // k
    x2 = x2.reshape(Mr, W)                      # free bitcast, no copy

    def _prep(p):
        return jnp.tile(jnp.broadcast_to(p.astype(jnp.float32), (D,)), k)

    # Single packed (3, W) parameter slab: one pipeline buffer instead of three.
    params = jnp.stack([_prep(a), _prep(b), _prep(g)])

    tm = _pick_row_tile(Mr, W)
    grid = (pl.cdiv(Mr, tm),)

    kernel = functools.partial(
        _ps_channel_kernel, threshold=threshold, minimum=minimum)

    itemsize = jnp.dtype(orig_dtype).itemsize
    n = Mr * W
    cost = pl.CostEstimate(
        flops=6 * n,
        transcendentals=2 * n,
        bytes_accessed=2 * n * itemsize)

    out2 = pl.pallas_call(
        kernel,
        out_shape=jax.ShapeDtypeStruct((Mr, W), orig_dtype),
        grid_spec=pltpu.PrefetchScalarGridSpec(
            num_scalar_prefetch=0,
            grid=grid,
            in_specs=[
                pl.BlockSpec((tm, W), lambda i: (i, 0)),   # x tile (lane-dense)
                pl.BlockSpec((3, W), lambda i: (0, 0)),    # packed alpha/beta/gamma
            ],
            out_specs=pl.BlockSpec((tm, W), lambda i: (i, 0)),
        ),
        compiler_params=pltpu.CompilerParams(
            dimension_semantics=("parallel",)),
        cost_estimate=cost,
    )(x2, params)

    return out2.reshape(orig_shape)


def parametric_softplus(x, alpha, beta, gamma, *, threshold=20.0, minimum=None):
    """x: any shape (NCHW expected); alpha/beta/gamma: shape (S,), S in {1, last_dim}."""
    assert threshold is None or threshold >= 10.0
    orig_shape = x.shape
    orig_dtype = x.dtype

    a = jnp.asarray(alpha, jnp.float32).reshape(-1)
    b = jnp.asarray(beta, jnp.float32).reshape(-1)
    g = jnp.asarray(gamma, jnp.float32).reshape(-1)
    S = max(a.shape[0], b.shape[0], g.shape[0])

    if S == 1:
        return _scalar_param_path(x, a, b, g, threshold, minimum,
                                  orig_shape, orig_dtype)
    return _channel_param_path(x, a, b, g, S, threshold, minimum,
                               orig_shape, orig_dtype)


def _reference(x, alpha, beta, gamma, threshold=20.0, minimum=None):
    """Pure-JAX reference matching the PyTorch forward."""
    shape = [1] * (x.ndim - 1) + [-1]
    a = jnp.asarray(alpha, jnp.float32).reshape(shape)
    b = jnp.asarray(beta, jnp.float32).reshape(shape)
    g = jnp.asarray(gamma, jnp.float32).reshape(shape)
    xf = x.astype(jnp.float32)
    shifted = b * xf + g
    sp = jnp.where(shifted > 20.0, shifted,
                   jnp.log1p(jnp.exp(jnp.minimum(shifted, 20.0))))
    if threshold is not None:
        sp = jnp.where(sp > threshold, shifted, sp)
    out = a * sp
    if minimum is not None:
        out = jnp.maximum(out, minimum)
    return out.astype(x.dtype)


if __name__ == "__main__":
    key = jax.random.PRNGKey(0)

    # NCHW input; scaled so some values cross the threshold region.
    x = jax.random.normal(key, (2, 4, 16, 16), dtype=jnp.float32) * 15.0

    # Default module config: shape=1, alpha=1, beta=1, gamma=0.
    alpha = jnp.full((1,), 1.0, dtype=jnp.float32)
    beta = jnp.full((1,), 1.0, dtype=jnp.float32)
    gamma = jnp.full((1,), 0.0, dtype=jnp.float32)

    out = parametric_softplus(x, alpha, beta, gamma, threshold=20.0, minimum=None)
    out = jax.block_until_ready(out)
    ref = _reference(x, alpha, beta, gamma, 20.0, None)
    assert out.shape == x.shape and out.dtype == x.dtype
    assert jnp.allclose(out, ref, atol=1e-5, rtol=1e-5)

    # Per-channel parameters (shape = W) with threshold < 20 and minimum set.
    k2, k3, k4 = jax.random.split(jax.random.PRNGKey(1), 3)
    alpha_c = jax.random.uniform(k2, (16,), jnp.float32, 0.5, 1.5)
    beta_c = jax.random.uniform(k3, (16,), jnp.float32, 0.5, 1.5)
    gamma_c = jax.random.normal(k4, (16,), jnp.float32)
    out_c = parametric_softplus(x, alpha_c, beta_c, gamma_c,
                                threshold=15.0, minimum=0.1)
    out_c = jax.block_until_ready(out_c)
    ref_c = _reference(x, alpha_c, beta_c, gamma_c, 15.0, 0.1)
    assert jnp.allclose(out_c, ref_c, atol=1e-5, rtol=1e-5)

    # Ragged element count (exercises the rare padding fallback path).
    x3 = jax.random.normal(jax.random.PRNGKey(2), (2, 3, 5, 16), jnp.float32) * 15.0
    out3 = parametric_softplus(x3, alpha, beta, gamma, threshold=20.0, minimum=0.0)
    out3 = jax.block_until_ready(out3)
    ref3 = _reference(x3, alpha, beta, gamma, 20.0, 0.0)
    assert jnp.allclose(out3, ref3, atol=1e-5, rtol=1e-5)

    print("KERNEL_OK")
</pallas_src>

<mosaic_0001>
module attributes {stable_mosaic.version = 11 : i64} {
  func.func @_ps_scalar_kernel(%arg0: i32, %arg1: memref<3xf32, #tpu.memory_space<smem>>, %arg2: memref<1x2048xf32, #tpu.memory_space<vmem>>, %arg3: memref<1x2048xf32, #tpu.memory_space<vmem>>) attributes {dimension_semantics = [#tpu.dimension_semantics<parallel>], iteration_bounds = array<i64: 1>, scalar_prefetch = 0 : i64, scratch_operands = 0 : i64, tpu.core_type = #tpu.core_type<tc>, window_params = [{transform_indices = @transform_0, window_bounds = array<i64: 3>}, {transform_indices = @transform_1, window_bounds = array<i64: 1, 2048>}, {transform_indices = @transform_2, window_bounds = array<i64: 1, 2048>}]} {
    %c0 = arith.constant 0 : index
    %0 = memref.load %arg1[%c0] : memref<3xf32, #tpu.memory_space<smem>>
    %c1 = arith.constant 1 : index
    %1 = memref.load %arg1[%c1] : memref<3xf32, #tpu.memory_space<smem>>
    %c2 = arith.constant 2 : index
    %2 = memref.load %arg1[%c2] : memref<3xf32, #tpu.memory_space<smem>>
    %c0_0 = arith.constant 0 : index
    %c0_1 = arith.constant 0 : index
    %3 = vector.load %arg2[%c0_0, %c0_1] : memref<1x2048xf32, #tpu.memory_space<vmem>>, vector<1x2048xf32>
    %4 = vector.broadcast %1 : f32 to vector<1x2048xf32>
    %5 = arith.mulf %4, %3 : vector<1x2048xf32>
    %6 = vector.broadcast %2 : f32 to vector<1x2048xf32>
    %7 = arith.addf %5, %6 : vector<1x2048xf32>
    %cst = arith.constant 2.000000e+01 : f32
    %8 = vector.broadcast %cst : f32 to vector<1x2048xf32>
    %9 = arith.minimumf %7, %8 : vector<1x2048xf32>
    %10 = math.exp %9 : vector<1x2048xf32>
    %11 = math.log1p %10 : vector<1x2048xf32>
    %cst_2 = arith.constant 2.000000e+01 : f32
    %12 = vector.broadcast %cst_2 : f32 to vector<1x2048xf32>
    %13 = arith.cmpf ogt, %7, %12 : vector<1x2048xf32>
    %14 = arith.select %13, %7, %11 : vector<1x2048xi1>, vector<1x2048xf32>
    %15 = vector.broadcast %0 : f32 to vector<1x2048xf32>
    %16 = arith.mulf %15, %14 : vector<1x2048xf32>
    %c0_3 = arith.constant 0 : index
    %c0_4 = arith.constant 0 : index
    %17 = vector.load %arg3[%c0_3, %c0_4] : memref<1x2048xf32, #tpu.memory_space<vmem>>, vector<1x2048xf32>
    tpu.vector_store %arg3[%c0_3, %c0_4], %16 {strides = array<i32>} : memref<1x2048xf32, #tpu.memory_space<vmem>>, vector<1x2048xf32>,
    return
  }
  func.func @transform_0(%arg0: i32) -> i32 {
    %c0_i32 = arith.constant 0 : i32
    %c0_i32_0 = arith.constant 0 : i32
    return %c0_i32 : i32
  }
  func.func @transform_1(%arg0: i32) -> (i32, i32) {
    %c0_i32 = arith.constant 0 : i32
    %c0_i32_0 = arith.constant 0 : i32
    return %arg0, %c0_i32 : i32, i32
  }
  func.func @transform_2(%arg0: i32) -> (i32, i32) {
    %c0_i32 = arith.constant 0 : i32
    %c0_i32_0 = arith.constant 0 : i32
    return %arg0, %c0_i32 : i32, i32
  }
}

</mosaic_0001>

<llo_original>
// kernel: tpu_custom_call.1
$region0: #{tpu_custom_call.1}
  #allocation0 [shape = 'u32[]', space=smem, size = 0x4, offset = 0x4, fixed_abs, tag = 'smem constant byte address 0x4 - core index']
  #allocation1 [shape = 'u32[144,128]{1,0:T(1,128)}', space=vmem, size = 0x12000, scoped, tag = 'internal scratch']
  %s0 = inlined_call_operand.hbm [shape: f32[3], index: 0, kind: input, shape index: {}]
  %s1 = inlined_call_operand.hbm [shape: f32[1,2048], index: 1, kind: input, shape index: {}]
  %s2 = inlined_call_operand.hbm [shape: f32[1,2048], index: 2, kind: output, shape index: {}]
  %s3 = sld [smem:[#allocation0]]
  $region26: #{tpu_custom_call.1} parent=0
    _
  %s5 = ssub.s32 1, %s3
  %s6 = scalar_select 0, %s5, %s3
  $region1: #{tpu_custom_call.1} parent=0
    #allocation2 [shape = 'u8[512]{0}', space=smem, size = 0x200, scoped, tag = 'input window, operand 0, single buffered']
    #allocation3 [shape = 's32[1]{0}', space=sflag, size = 0x4, scoped, tag = 'scoped memory for tpu_custom_call.1']
    #allocation4 [shape = 's32[1]{0}', space=sflag, size = 0x4, scoped, tag = 'scoped memory for tpu_custom_call.1']
    #allocation5 [shape = 's32[1]{0}', space=sflag, size = 0x4, scoped, tag = 'scoped memory for tpu_custom_call.1']
    #allocation6 [shape = 'u8[8192]{0}', space=vmem, size = 0x2000, scoped, tag = 'input window, operand 1, single buffered']
    #allocation7 [shape = 'u8[8192]{0}', space=vmem, size = 0x2000, scoped, tag = 'output window, operand 0, single buffered']
    %7 = vsyncpa [#allocation5], 0
    %8 = vsyncpa [#allocation3], 0
    %9 = vsyncpa [#allocation4], 0
    // Predicated region
    $region2: #{tpu_custom_call.1} parent=1 // pred_check
      _
    $region3: #{tpu_custom_call.1} parent=1 // pred_check_branch
      %11 = sbr.rel (0) target = $region5
    $region4: #{tpu_custom_call.1} parent=1 // pred_region
      %s13 = ssub.s32 16, 16
      %14 = vsyncadd [#allocation5], %s13
      %17 = dma.hbm_to_smem %s0, 16, [#allocation2], [#allocation5]
    $region5: #{tpu_custom_call.1} parent=1 // pred_fallthru
      _
    // Predicated region
    $region6: #{tpu_custom_call.1} parent=1 // pred_check
      _
    $region7: #{tpu_custom_call.1} parent=1 // pred_check_branch
      %19 = sbr.rel (0) target = $region9
    $region8: #{tpu_custom_call.1} parent=1 // pred_region
      %s21 = ssub.s32 256, 256
      %22 = vsyncadd [#allocation3], %s21
      %s24 = sshll.u32 [#allocation6], 4
      %s25 = int_to_ptr.vmem [resolvable:$true] %s24
      %27 = dma.hbm_to_vmem [thread:$0]  %s1, 256, %s25, [#allocation3]
    $region9: #{tpu_custom_call.1} parent=1 // pred_fallthru
      _
    // Predicated region
    $region10: #{tpu_custom_call.1} parent=1 // pred_check
      _
    $region11: #{tpu_custom_call.1} parent=1 // pred_check_branch
      %29 = sbr.rel (0) target = $region13
    $region12: #{tpu_custom_call.1} parent=1 // pred_region
      %30 = dma.done [#allocation5], 16
    $region13: #{tpu_custom_call.1} parent=1 // pred_fallthru
      _
    // Predicated region
    $region14: #{tpu_custom_call.1} parent=1 // pred_check
      _
    $region15: #{tpu_custom_call.1} parent=1 // pred_check_branch
      %32 = sbr.rel (0) target = $region17
    $region16: #{tpu_custom_call.1} parent=1 // pred_region
      %33 = dma.done [#allocation3], 256
    $region17: #{tpu_custom_call.1} parent=1 // pred_fallthru
      _
    %34 = sfence
    %s35 = sld [smem:[#allocation2]]
    %s36 = sld [smem:[#allocation2 + $0x1]]
    %s37 = sld [smem:[#allocation2 + $0x2]]
    %v38 = vld [vmem:[#allocation6] sm:$0xff]
    %v39 = vld [vmem:[#allocation6 + $0x8] sm:$0xff]
    %v40 = vstv %s36
    %v41 = vmul.f32 %v40, %v38
    %v42 = vmul.f32 %v40, %v39
    %v43 = vstv %s37
    %v44 = vadd.f32 %v41, %v43
    %v45 = vadd.f32 %v42, %v43
    %v46 = vmin.f32 %v44, 20.0
    %v47 = vmin.f32 %v45, 20.0
    %v48 = vmul.f32 %v46, 1.442695
    %v49 = vpow.pop %v48
    %v50 = vmul.f32 %v47, 1.442695
    %v51 = vpow.pop %v50
    %v52 = vadd.f32 %v49, 1.0
    %v53 = vlog2.pop %v52
    %v54 = vmul.f32 %v53, 0.6931472
    %v55 = vmul.f32 -0.5, %v49
    %v56 = vadd.f32 %v55, 1.0
    %v57 = vmul.f32 %v56, %v49
    %v58 = vand.u32 2147483647, %v49
    %vm59 = vcmp.lt.f32.partialorder %v58, 0.0004427343
    %v60 = vsel %vm59, %v57, %v54
    %v61 = vadd.f32 %v51, 1.0
    %v62 = vlog2.pop %v61
    %v63 = vmul.f32 %v62, 0.6931472
    %v64 = vmul.f32 -0.5, %v51
    %v65 = vadd.f32 %v64, 1.0
    %v66 = vmul.f32 %v65, %v51
    %v67 = vand.u32 2147483647, %v51
    %vm68 = vcmp.lt.f32.partialorder %v67, 0.0004427343
    %v69 = vsel %vm68, %v66, %v63
    %vm70 = vcmp.gt.f32.partialorder %v44, 20.0
    %vm71 = vcmp.gt.f32.partialorder %v45, 20.0
    %v72 = vsel %vm70, %v44, %v60
    %v73 = vsel %vm71, %v45, %v69
    %v74 = vstv %s35
    %v75 = vmul.f32 %v74, %v72
    %v76 = vmul.f32 %v74, %v73
    %77 = vst [vmem:[#allocation7] sm:$0xff] %v75
    %78 = vst [vmem:[#allocation7 + $0x8] sm:$0xff] %v76
    // Predicated region
    $region18: #{tpu_custom_call.1} parent=1 // pred_check
      _
    $region19: #{tpu_custom_call.1} parent=1 // pred_check_branch
      %80 = sbr.rel (0) target = $region21
    $region20: #{tpu_custom_call.1} parent=1 // pred_region
      %s82 = ssub.s32 256, 256
      %83 = vsyncadd [#allocation4], %s82
      %s85 = sshll.u32 [#allocation7], 4
      %s86 = int_to_ptr.vmem [resolvable:$true] %s85
      %88 = dma.vmem_to_hbm [thread:$0]  %s86, 256, %s2, [#allocation4]
    $region21: #{tpu_custom_call.1} parent=1 // pred_fallthru
      _
    // Predicated region
    $region22: #{tpu_custom_call.1} parent=1 // pred_check
      _
    $region23: #{tpu_custom_call.1} parent=1 // pred_check_branch
      %90 = sbr.rel (0) target = $region25
    $region24: #{tpu_custom_call.1} parent=1 // pred_region
      %91 = dma.done [#allocation4], 256
    $region25: #{tpu_custom_call.1} parent=1 // pred_fallthru
      _
    %92 = vsyncpa [#allocation3], 1
    %93 = vsyncpa [#allocation4], 1
    %94 = vsyncpa [#allocation5], 1

</llo_original>
